<compile_context>
chip_gen: v7x
topology: tpu7x:2x2x1
jax: 0.10.0
libtpu: 0.0.40
codegen_flags: <defaults>
</compile_context>

<pallas_src>
import functools

import jax
import jax.numpy as jnp
from jax.experimental import pallas as pl
from jax.experimental.pallas import tpu as pltpu


def _ffn_kernel(x_ref, w1_ref, b1_ref, w2_ref, b2_ref, gamma_ref, beta_ref,
                o_ref, acc_ref, *, activation: str, eps: float):
    f = pl.program_id(1)

    # Init the f32 accumulator at the first reduction step with the residual
    # and bias2 already folded in (one fewer pass over (tm, D) in the epilogue).
    @pl.when(f == 0)
    def _():
        acc_ref[...] = (x_ref[...].astype(jnp.float32)
                        + b2_ref[...].astype(jnp.float32))

    # ---- linear1 slice: (tm, D) @ (D, tf) -> (tm, tf), f32 on the MXU ----
    h = jnp.dot(x_ref[...], w1_ref[...], preferred_element_type=jnp.float32)
    h = h + b1_ref[...].astype(jnp.float32)

    # Activation on the f32 result (VPU/EUP slots; MXU-bound kernel hides it).
    if activation == "relu":
        h = jnp.maximum(h, 0.0)
    else:  # "gelu" (exact, matches torch.nn.functional.gelu default)
        h = jax.nn.gelu(h, approximate=False)

    # ---- linear2 partial: (tm, tf) @ (tf, D) accumulated in VMEM scratch ----
    acc_ref[...] += jnp.dot(h.astype(w2_ref.dtype), w2_ref[...],
                            preferred_element_type=jnp.float32)

    # ---- epilogue at the last Dff step: LayerNorm + single lane-dense store ----
    @pl.when(f == pl.num_programs(1) - 1)
    def _():
        y = acc_ref[...]                       # = x + ffn(x) + b2, f32
        mean = jnp.mean(y, axis=-1, keepdims=True)
        cent = y - mean
        var = jnp.mean(cent * cent, axis=-1, keepdims=True)
        y = cent * jax.lax.rsqrt(var + eps)    # rsqrt -> EUP slot
        y = (y * gamma_ref[...].astype(jnp.float32)
             + beta_ref[...].astype(jnp.float32))
        o_ref[...] = y.astype(o_ref.dtype)


def _round_up(n, m):
    return ((n + m - 1) // m) * m


def _pick_tile(dim, candidates):
    for c in candidates:
        if dim % c == 0:
            return c
    return dim  # fall back to the full (untiled) dimension


def ffn_layer_forward(x, w1, b1, w2, b2, gamma, beta, *,
                      activation="relu", eps=1e-5,
                      block_m=None, block_f=None):
    """FFNLayer.forward_post.  x: (..., d_model); any leading layout (L, B, ...)."""
    if activation not in ("relu", "gelu"):
        # TODO(synk): activation='glu' halves the hidden width; not supported here.
        raise ValueError(f"unsupported activation: {activation}")
    # TODO(synk): normalize_before=True (forward_pre) path not implemented.
    # TODO(synk): training-mode dropout (p>0) not implemented; p=0.0 => identity.

    orig_shape = x.shape
    D = orig_shape[-1]
    Dff = w1.shape[1]
    assert w1.shape == (D, Dff) and w2.shape == (Dff, D)
    assert b1.shape[-1] == Dff and b2.shape[-1] == D

    x2 = x.reshape(-1, D)
    M = x2.shape[0]

    # Tile choice: lane-dense output (full D last dim); 256-row tiles where the
    # problem allows (feeds the v6e/v7x 2x256x256 MXU).  Sizes stay well under
    # the default scoped-VMEM limit even with double-buffered W1/W2 streams,
    # so this is safe on v7x's 64 MiB VMEM too.
    tm = block_m if block_m is not None else min(256, _round_up(M, 8))
    tf = block_f if block_f is not None else _pick_tile(Dff, (512, 256, 128))
    assert Dff % tf == 0, (Dff, tf)
    assert tm % 8 == 0, tm

    # Pad the flattened token axis so M divides the row tile; padded rows are
    # zeros and are sliced off afterwards (LayerNorm on a zero row is finite).
    M_pad = _round_up(M, tm)
    if M_pad != M:
        x2 = jnp.pad(x2, ((0, M_pad - M), (0, 0)))

    b1r = b1.reshape(1, Dff)
    b2r = b2.reshape(1, D)
    gr = gamma.reshape(1, D)
    br = beta.reshape(1, D)

    kernel = functools.partial(_ffn_kernel, activation=activation, eps=eps)

    itemsize = jnp.dtype(x.dtype).itemsize
    cost = pl.CostEstimate(
        flops=4 * M_pad * D * Dff,                       # two matmuls
        transcendentals=M_pad,                           # one rsqrt per row
        bytes_accessed=itemsize * (2 * M_pad * D + w1.size + w2.size),
    )

    out = pl.pallas_call(
        kernel,
        out_shape=jax.ShapeDtypeStruct((M_pad, D), x.dtype),
        grid_spec=pltpu.PrefetchScalarGridSpec(
            num_scalar_prefetch=0,
            grid=(M_pad // tm, Dff // tf),            # reduction (Dff) axis last
            in_specs=[
                pl.BlockSpec((tm, D), lambda m, f: (m, 0)),   # x  (resident across f)
                pl.BlockSpec((D, tf), lambda m, f: (0, f)),   # W1 slice (streams)
                pl.BlockSpec((1, tf), lambda m, f: (0, f)),   # b1 slice
                pl.BlockSpec((tf, D), lambda m, f: (f, 0)),   # W2 slice (streams)
                pl.BlockSpec((1, D),  lambda m, f: (0, 0)),   # b2        (resident)
                pl.BlockSpec((1, D),  lambda m, f: (0, 0)),   # LN gamma  (resident)
                pl.BlockSpec((1, D),  lambda m, f: (0, 0)),   # LN beta   (resident)
            ],
            out_specs=pl.BlockSpec((tm, D), lambda m, f: (m, 0)),  # accumulator-resident
            scratch_shapes=[pltpu.VMEM((tm, D), jnp.float32)],
        ),
        compiler_params=pltpu.CompilerParams(
            # M tiles independent -> shard across v7x's 2 TCs; Dff is the reduction.
            dimension_semantics=("parallel", "arbitrary")),
        cost_estimate=cost,
    )(x2, w1, b1r, w2, b2r, gr, br)

    if M_pad != M:
        out = out[:M]
    return out.reshape(orig_shape)


def _ffn_reference(x2, w1, b1, w2, b2, gamma, beta, eps=1e-5):
    h = jnp.maximum(x2 @ w1 + b1, 0.0)
    y = x2 + h @ w2 + b2
    mean = jnp.mean(y, axis=-1, keepdims=True)
    var = jnp.mean((y - mean) ** 2, axis=-1, keepdims=True)
    return (y - mean) * jax.lax.rsqrt(var + eps) * gamma + beta


if __name__ == "__main__":
    # Small shapes consistent with the module: tgt is (seq, batch, d_model).
    L, B, D, DFF = 8, 2, 128, 256
    key = jax.random.PRNGKey(0)
    k = jax.random.split(key, 5)

    lim1 = (6.0 / (D + DFF)) ** 0.5    # xavier_uniform, like _reset_parameters
    lim2 = (6.0 / (DFF + D)) ** 0.5
    x = jax.random.normal(k[0], (L, B, D), jnp.float32)
    w1 = jax.random.uniform(k[1], (D, DFF), jnp.float32, -lim1, lim1)
    b1 = 0.1 * jax.random.normal(k[2], (DFF,), jnp.float32)
    w2 = jax.random.uniform(k[3], (DFF, D), jnp.float32, -lim2, lim2)
    b2 = 0.1 * jax.random.normal(k[4], (D,), jnp.float32)
    gamma = jnp.ones((D,), jnp.float32)
    beta = jnp.zeros((D,), jnp.float32)

    ref = _ffn_reference(x.reshape(-1, D), w1, b1, w2, b2, gamma, beta).reshape(x.shape)

    # 1) explicit tiles: exercises both grid axes (2 x 2 grid) at these shapes.
    out = ffn_layer_forward(x, w1, b1, w2, b2, gamma, beta,
                            activation="relu", block_m=8, block_f=128)
    out = jax.block_until_ready(out)
    assert out.shape == x.shape
    err = float(jnp.max(jnp.abs(out - ref)))
    assert err < 1e-2, f"max abs error too large (explicit tiles): {err}"

    # 2) auto tiles + non-divisible token count: exercises the padding path.
    x_odd = x[:7]                                   # M = 14 -> padded to 16
    ref_odd = _ffn_reference(x_odd.reshape(-1, D), w1, b1, w2, b2,
                             gamma, beta).reshape(x_odd.shape)
    out_odd = ffn_layer_forward(x_odd, w1, b1, w2, b2, gamma, beta,
                                activation="relu")
    out_odd = jax.block_until_ready(out_odd)
    assert out_odd.shape == x_odd.shape
    err_odd = float(jnp.max(jnp.abs(out_odd - ref_odd)))
    assert err_odd < 1e-2, f"max abs error too large (padded path): {err_odd}"

    print("KERNEL_OK")
</pallas_src>

<mosaic_0001>
module attributes {stable_mosaic.version = 11 : i64} {
  func.func @_ffn_kernel(%arg0: i32, %arg1: i32, %arg2: memref<8x128xf32, #tpu.memory_space<vmem>>, %arg3: memref<128x128xf32, #tpu.memory_space<vmem>>, %arg4: memref<1x128xf32, #tpu.memory_space<vmem>>, %arg5: memref<128x128xf32, #tpu.memory_space<vmem>>, %arg6: memref<1x128xf32, #tpu.memory_space<vmem>>, %arg7: memref<1x128xf32, #tpu.memory_space<vmem>>, %arg8: memref<1x128xf32, #tpu.memory_space<vmem>>, %arg9: memref<8x128xf32, #tpu.memory_space<vmem>>, %arg10: memref<8x128xf32, #tpu.memory_space<vmem>>) attributes {dimension_semantics = [#tpu.dimension_semantics<parallel>, #tpu.dimension_semantics<arbitrary>], iteration_bounds = array<i64: 2, 2>, scalar_prefetch = 0 : i64, scratch_operands = 1 : i64, tpu.core_type = #tpu.core_type<tc>, window_params = [{transform_indices = @transform_0, window_bounds = array<i64: 8, 128>}, {transform_indices = @transform_1, window_bounds = array<i64: 128, 128>}, {transform_indices = @transform_2, window_bounds = array<i64: 1, 128>}, {transform_indices = @transform_3, window_bounds = array<i64: 128, 128>}, {pipeline_mode = #tpu.pipeline_mode<synchronous>, transform_indices = @transform_4, window_bounds = array<i64: 1, 128>}, {pipeline_mode = #tpu.pipeline_mode<synchronous>, transform_indices = @transform_5, window_bounds = array<i64: 1, 128>}, {pipeline_mode = #tpu.pipeline_mode<synchronous>, transform_indices = @transform_6, window_bounds = array<i64: 1, 128>}, {transform_indices = @transform_7, window_bounds = array<i64: 8, 128>}]} {
    %c0_i32 = arith.constant 0 : i32
    %0 = arith.cmpi eq, %arg1, %c0_i32 : i32
    %1 = arith.extui %0 : i1 to i32
    %c0_i32_0 = arith.constant 0 : i32
    %2 = arith.cmpi ne, %1, %c0_i32_0 : i32
    scf.if %2 {
      %c0_15 = arith.constant 0 : index
      %c0_16 = arith.constant 0 : index
      %19 = vector.load %arg2[%c0_15, %c0_16] : memref<8x128xf32, #tpu.memory_space<vmem>>, vector<8x128xf32>
      %c0_17 = arith.constant 0 : index
      %c0_18 = arith.constant 0 : index
      %20 = vector.load %arg6[%c0_17, %c0_18] : memref<1x128xf32, #tpu.memory_space<vmem>>, vector<1x128xf32>
      %21 = vector.broadcast %20 : vector<1x128xf32> to vector<8x128xf32>
      %22 = arith.addf %19, %21 : vector<8x128xf32>
      %c0_19 = arith.constant 0 : index
      %c0_20 = arith.constant 0 : index
      %23 = vector.load %arg10[%c0_19, %c0_20] : memref<8x128xf32, #tpu.memory_space<vmem>>, vector<8x128xf32>
      tpu.vector_store %arg10[%c0_19, %c0_20], %22 {strides = array<i32>} : memref<8x128xf32, #tpu.memory_space<vmem>>, vector<8x128xf32>,
    } else {
    }
    %c0 = arith.constant 0 : index
    %c0_1 = arith.constant 0 : index
    %3 = vector.load %arg2[%c0, %c0_1] : memref<8x128xf32, #tpu.memory_space<vmem>>, vector<8x128xf32>
    %c0_2 = arith.constant 0 : index
    %c0_3 = arith.constant 0 : index
    %4 = vector.load %arg3[%c0_2, %c0_3] : memref<128x128xf32, #tpu.memory_space<vmem>>, vector<128x128xf32>
    %cst = arith.constant dense<0.000000e+00> : vector<8x128xf32>
    %5 = tpu.matmul %3, %4, %cst {dimension_numbers = #tpu.dot_dimension_numbers<[1], [0], [0], [1], [0, 0, 1, 1], [], []>} : vector<8x128xf32>, vector<128x128xf32>, vector<8x128xf32> -> vector<8x128xf32>
    %c0_4 = arith.constant 0 : index
    %c0_5 = arith.constant 0 : index
    %6 = vector.load %arg4[%c0_4, %c0_5] : memref<1x128xf32, #tpu.memory_space<vmem>>, vector<1x128xf32>
    %7 = vector.broadcast %6 : vector<1x128xf32> to vector<8x128xf32>
    %8 = arith.addf %5, %7 : vector<8x128xf32>
    %cst_6 = arith.constant 0.000000e+00 : f32
    %9 = vector.broadcast %cst_6 : f32 to vector<8x128xf32>
    %10 = arith.maximumf %8, %9 : vector<8x128xf32>
    %c0_7 = arith.constant 0 : index
    %c0_8 = arith.constant 0 : index
    %11 = vector.load %arg10[%c0_7, %c0_8] : memref<8x128xf32, #tpu.memory_space<vmem>>, vector<8x128xf32>
    %c0_9 = arith.constant 0 : index
    %c0_10 = arith.constant 0 : index
    %12 = vector.load %arg5[%c0_9, %c0_10] : memref<128x128xf32, #tpu.memory_space<vmem>>, vector<128x128xf32>
    %cst_11 = arith.constant dense<0.000000e+00> : vector<8x128xf32>
    %13 = tpu.matmul %10, %12, %cst_11 {dimension_numbers = #tpu.dot_dimension_numbers<[1], [0], [0], [1], [0, 0, 1, 1], [], []>} : vector<8x128xf32>, vector<128x128xf32>, vector<8x128xf32> -> vector<8x128xf32>
    %14 = arith.addf %11, %13 : vector<8x128xf32>
    %c0_12 = arith.constant 0 : index
    %c0_13 = arith.constant 0 : index
    %15 = vector.load %arg10[%c0_12, %c0_13] : memref<8x128xf32, #tpu.memory_space<vmem>>, vector<8x128xf32>
    tpu.vector_store %arg10[%c0_12, %c0_13], %14 {strides = array<i32>} : memref<8x128xf32, #tpu.memory_space<vmem>>, vector<8x128xf32>,
    %c1_i32 = arith.constant 1 : i32
    %16 = arith.cmpi eq, %arg1, %c1_i32 : i32
    %17 = arith.extui %16 : i1 to i32
    %c0_i32_14 = arith.constant 0 : i32
    %18 = arith.cmpi ne, %17, %c0_i32_14 : i32
    scf.if %18 {
      %c0_15 = arith.constant 0 : index
      %c0_16 = arith.constant 0 : index
      %19 = vector.load %arg10[%c0_15, %c0_16] : memref<8x128xf32, #tpu.memory_space<vmem>>, vector<8x128xf32>
      %cst_17 = arith.constant dense<0.000000e+00> : vector<8xf32>
      %20 = vector.multi_reduction <add>, %19, %cst_17 [1] : vector<8x128xf32> to vector<8xf32>
      %21 = vector.shape_cast %20 : vector<8xf32> to vector<8x1xf32>
      %cst_18 = arith.constant 1.280000e+02 : f32
      %22 = vector.broadcast %cst_18 : f32 to vector<8x1xf32>
      %23 = arith.divf %21, %22 : vector<8x1xf32>
      %24 = vector.broadcast %23 : vector<8x1xf32> to vector<8x128xf32>
      %25 = arith.subf %19, %24 : vector<8x128xf32>
      %26 = arith.mulf %25, %25 : vector<8x128xf32>
      %cst_19 = arith.constant dense<0.000000e+00> : vector<8xf32>
      %27 = vector.multi_reduction <add>, %26, %cst_19 [1] : vector<8x128xf32> to vector<8xf32>
      %28 = vector.shape_cast %27 : vector<8xf32> to vector<8x1xf32>
      %cst_20 = arith.constant 1.280000e+02 : f32
      %29 = vector.broadcast %cst_20 : f32 to vector<8x1xf32>
      %30 = arith.divf %28, %29 : vector<8x1xf32>
      %cst_21 = arith.constant 9.99999974E-6 : f32
      %31 = vector.broadcast %cst_21 : f32 to vector<8x1xf32>
      %32 = arith.addf %30, %31 : vector<8x1xf32>
      %33 = math.rsqrt %32 : vector<8x1xf32>
      %34 = vector.broadcast %33 : vector<8x1xf32> to vector<8x128xf32>
      %35 = arith.mulf %25, %34 : vector<8x128xf32>
      %c0_22 = arith.constant 0 : index
      %c0_23 = arith.constant 0 : index
      %36 = vector.load %arg7[%c0_22, %c0_23] : memref<1x128xf32, #tpu.memory_space<vmem>>, vector<1x128xf32>
      %37 = vector.broadcast %36 : vector<1x128xf32> to vector<8x128xf32>
      %38 = arith.mulf %35, %37 : vector<8x128xf32>
      %c0_24 = arith.constant 0 : index
      %c0_25 = arith.constant 0 : index
      %39 = vector.load %arg8[%c0_24, %c0_25] : memref<1x128xf32, #tpu.memory_space<vmem>>, vector<1x128xf32>
      %40 = vector.broadcast %39 : vector<1x128xf32> to vector<8x128xf32>
      %41 = arith.addf %38, %40 : vector<8x128xf32>
      %c0_26 = arith.constant 0 : index
      %c0_27 = arith.constant 0 : index
      %42 = vector.load %arg9[%c0_26, %c0_27] : memref<8x128xf32, #tpu.memory_space<vmem>>, vector<8x128xf32>
      tpu.vector_store %arg9[%c0_26, %c0_27], %41 {strides = array<i32>} : memref<8x128xf32, #tpu.memory_space<vmem>>, vector<8x128xf32>,
    } else {
    }
    return
  }
  func.func @transform_0(%arg0: i32, %arg1: i32) -> (i32, i32) {
    %c0_i32 = arith.constant 0 : i32
    %c0_i32_0 = arith.constant 0 : i32
    return %arg0, %c0_i32 : i32, i32
  }
  func.func @transform_1(%arg0: i32, %arg1: i32) -> (i32, i32) {
    %c0_i32 = arith.constant 0 : i32
    %c0_i32_0 = arith.constant 0 : i32
    return %c0_i32, %arg1 : i32, i32
  }
  func.func @transform_2(%arg0: i32, %arg1: i32) -> (i32, i32) {
    %c0_i32 = arith.constant 0 : i32
    %c0_i32_0 = arith.constant 0 : i32
    return %c0_i32, %arg1 : i32, i32
  }
  func.func @transform_3(%arg0: i32, %arg1: i32) -> (i32, i32) {
    %c0_i32 = arith.constant 0 : i32
    %c0_i32_0 = arith.constant 0 : i32
    return %arg1, %c0_i32 : i32, i32
  }
  func.func @transform_4(%arg0: i32, %arg1: i32) -> (i32, i32) {
    %c0_i32 = arith.constant 0 : i32
    %c0_i32_0 = arith.constant 0 : i32
    %c0_i32_1 = arith.constant 0 : i32
    return %c0_i32, %c0_i32_0 : i32, i32
  }
  func.func @transform_5(%arg0: i32, %arg1: i32) -> (i32, i32) {
    %c0_i32 = arith.constant 0 : i32
    %c0_i32_0 = arith.constant 0 : i32
    %c0_i32_1 = arith.constant 0 : i32
    return %c0_i32, %c0_i32_0 : i32, i32
  }
  func.func @transform_6(%arg0: i32, %arg1: i32) -> (i32, i32) {
    %c0_i32 = arith.constant 0 : i32
    %c0_i32_0 = arith.constant 0 : i32
    %c0_i32_1 = arith.constant 0 : i32
    return %c0_i32, %c0_i32_0 : i32, i32
  }
  func.func @transform_7(%arg0: i32, %arg1: i32) -> (i32, i32) {
    %c0_i32 = arith.constant 0 : i32
    %c0_i32_0 = arith.constant 0 : i32
    return %arg0, %c0_i32 : i32, i32
  }
}

</mosaic_0001>

<llo_original>
// kernel: tpu_custom_call.1
$region0: #{tpu_custom_call.1}
  #allocation0 [shape = 'u32[]', space=smem, size = 0x4, offset = 0x4, fixed_abs, tag = 'smem constant byte address 0x4 - core index']
  #allocation1 [shape = 'u32[144,128]{1,0:T(1,128)}', space=vmem, size = 0x12000, scoped, tag = 'internal scratch']
  #allocation2 [shape = 'f32[8,128]{1,0:T(8,128)}', space=vmem, size = 0x1000, scoped, tag = 'scratch operand']
  %s0 = inlined_call_operand.hbm [shape: f32[16,128], index: 0, kind: input, shape index: {}]
  %s1 = inlined_call_operand.hbm [shape: f32[128,256], index: 1, kind: input, shape index: {}]
  %s2 = inlined_call_operand.vmem [shape: f32[1,256], index: 2, kind: input, shape index: {}]
  %s3 = inlined_call_operand.hbm [shape: f32[256,128], index: 3, kind: input, shape index: {}]
  %s4 = inlined_call_operand.vmem [shape: f32[1,128], index: 4, kind: input, shape index: {}]
  %s5 = inlined_call_operand.vmem [shape: f32[1,128], index: 5, kind: input, shape index: {}]
  %s6 = inlined_call_operand.vmem [shape: f32[1,128], index: 6, kind: input, shape index: {}]
  %s7 = inlined_call_operand.hbm [shape: f32[16,128], index: 7, kind: output, shape index: {}]
  %s8 = sld [smem:[#allocation0]]
  $region81: #{tpu_custom_call.1} parent=0
    _
  %s10 = ssub.s32 1, %s8
  %s11 = scalar_select 0, %s10, %s8
  $region1: #{tpu_custom_call.1} parent=0
    #allocation3 [shape = 'u8[8192]{0}', space=vmem, size = 0x2000, scoped, tag = 'input window, operand 0']
    #allocation4 [shape = 's32[2]{0}', space=sflag, size = 0x8, scoped, tag = 'scoped memory for tpu_custom_call.1']
    #allocation5 [shape = 's32[2]{0}', space=sflag, size = 0x8, scoped, tag = 'scoped memory for tpu_custom_call.1']
    #allocation6 [shape = 'u8[131072]{0}', space=vmem, size = 0x20000, scoped, tag = 'input window, operand 1']
    #allocation7 [shape = 's32[2]{0}', space=sflag, size = 0x8, scoped, tag = 'scoped memory for tpu_custom_call.1']
    #allocation8 [shape = 'u8[131072]{0}', space=vmem, size = 0x20000, scoped, tag = 'input window, operand 3']
    #allocation9 [shape = 'u8[8192]{0}', space=vmem, size = 0x2000, scoped, tag = 'output window, operand 0']
    %12 = vsyncpa [#allocation4], 0
    %s13 = scalar_lea.sflag [#allocation4], 1
    %14 = vsyncpa %s13, 0
    %15 = vsyncpa [#allocation7], 0
    %s16 = scalar_lea.sflag [#allocation7], 1
    %17 = vsyncpa %s16, 0
    %18 = vsyncpa [#allocation5], 0
    %s19 = scalar_lea.sflag [#allocation5], 1
    %20 = vsyncpa %s19, 0
    loop: start=0, step=1, limit=6
    $region2: #{tpu_custom_call.1} parent=1 // loop_pre_header
      _
    $region3: #{tpu_custom_call.1} parent=1 // loop_header
      %s22 = sphi 0, %s26
      %p23 = scmp.ge.s32.totalorder %s22, 6
      %s29 = sphi 0, %s41
      %s30 = sphi 0, %s37
      %s31 = sphi 0, %s29
      %s32 = sphi 0, %s30
      %s33 = sphi 0, %s31
      %s34 = sphi 0, %s32
      %s44 = sphi 0, %s46
      %s47 = sphi 0, %s44
      %s48 = sphi 0, %s47
      %s64 = sphi 0, %s48
      %s70 = sphi 0, %s72
      %s73 = sphi 0, %s70
      %s74 = sphi 0, %s73
      %s90 = sphi 0, %s74
      %s96 = sphi 0, %s98
      %s99 = sphi 0, %s96
      %s100 = sphi 0, %s99
      %s116 = sphi 0, %s100
      %s122 = sphi 0, %s124
      %s125 = sphi 0, %s122
      %s126 = sphi 0, %s125
      %s142 = sphi 0, %s126
      %s146 = sphi 0, %s146
      %s148 = sphi 0, %s146
      %s149 = sphi 0, %s148
      %s163 = sphi 0, %s149
      %s167 = sphi 0, %s167
      %s169 = sphi 0, %s167
      %s170 = sphi 0, %s169
      %s184 = sphi 0, %s170
      %s188 = sphi 0, %s188
      %s190 = sphi 0, %s188
      %s191 = sphi 0, %s190
      %s205 = sphi 0, %s191
      %s211 = sphi 0, %s213
      %s214 = sphi 0, %s211
      %s215 = sphi 0, %s214
      %s231 = sphi 0, %s215
    $region4: #{tpu_custom_call.1} parent=1 // loop_header_branch
      %25 = sbr.rel (%p23) target = $region8
    $region5: #{tpu_custom_call.1} parent=1 // loop_body
      %s27 = ssub.s32 %s22, 1
      %s28 = ssub.s32 %s22, 2
      %s35 = sadd.s32 1, %s30
      %p36 = scmp.ge.s32.totalorder %s35, 2
      %s37 = scalar_select %p36, 0, %s35
      %s38 = sadd.s32 1, %s29
      %s39 = scalar_select %p36, %s38, %s29
      %p40 = scmp.ge.s32.totalorder %s39, 2
      %s41 = scalar_select %p40, 0, %s39
      %s42 = ssub.s32 %s29, %s41
      %p43 = scmp.eq.s32.totalorder %s42, 0
      %s45 = sadd.s32 %s44, 1
      %s46 = scalar_select %p43, %s44, %s45
      %p49 = pneg %p43
      %p50 = scmp.eq.s32.totalorder %s22, 3
      %p51 = por %p49, %p50
      %p52 = scmp.ne.s32.totalorder %s44, %s47
      %p53 = scmp.eq.s32.totalorder %s22, 0
      %p54 = por %p52, %p53
      %p55 = scmp.ne.s32.totalorder %s44, %s47
      %p56 = scmp.eq.s32.totalorder %s27, 3
      %p57 = por %p55, %p56
      %p58 = scmp.ne.s32.totalorder %s47, %s48
      %p59 = scmp.eq.s32.totalorder %s27, 0
      %p60 = por %p58, %p59
      %p61 = scmp.ne.s32.totalorder %s47, %s48
      %p62 = scmp.eq.s32.totalorder %s28, 3
      %p63 = por %p61, %p62
      %p65 = scmp.ne.s32.totalorder %s48, %s64
      %p66 = scmp.eq.s32.totalorder %s28, 0
      %p67 = por %p65, %p66
      %s68 = ssub.s32 %s30, %s37
      %p69 = scmp.eq.s32.totalorder %s68, 0
      %s71 = sadd.s32 %s70, 1
      %s72 = scalar_select %p69, %s70, %s71
      %p75 = pneg %p69
      %p76 = scmp.eq.s32.totalorder %s22, 3
      %p77 = por %p75, %p76
      %p78 = scmp.ne.s32.totalorder %s70, %s73
      %p79 = scmp.eq.s32.totalorder %s22, 0
      %p80 = por %p78, %p79
      %p81 = scmp.ne.s32.totalorder %s70, %s73
      %p82 = scmp.eq.s32.totalorder %s27, 3
      %p83 = por %p81, %p82
      %p84 = scmp.ne.s32.totalorder %s73, %s74
      %p85 = scmp.eq.s32.totalorder %s27, 0
      %p86 = por %p84, %p85
      %p87 = scmp.ne.s32.totalorder %s73, %s74
      %p88 = scmp.eq.s32.totalorder %s28, 3
      %p89 = por %p87, %p88
      %p91 = scmp.ne.s32.totalorder %s74, %s90
      %p92 = scmp.eq.s32.totalorder %s28, 0
      %p93 = por %p91, %p92
      %s94 = ssub.s32 %s30, %s37
      %p95 = scmp.eq.s32.totalorder %s94, 0
      %s97 = sadd.s32 %s96, 1
      %s98 = scalar_select %p95, %s96, %s97
      %p101 = pneg %p95
      %p102 = scmp.eq.s32.totalorder %s22, 3
      %p103 = por %p101, %p102
      %p104 = scmp.ne.s32.totalorder %s96, %s99
      %p105 = scmp.eq.s32.totalorder %s22, 0
      %p106 = por %p104, %p105
      %p107 = scmp.ne.s32.totalorder %s96, %s99
      %p108 = scmp.eq.s32.totalorder %s27, 3
      %p109 = por %p107, %p108
      %p110 = scmp.ne.s32.totalorder %s99, %s100
      %p111 = scmp.eq.s32.totalorder %s27, 0
      %p112 = por %p110, %p111
      %p113 = scmp.ne.s32.totalorder %s99, %s100
      %p114 = scmp.eq.s32.totalorder %s28, 3
      %p115 = por %p113, %p114
      %p117 = scmp.ne.s32.totalorder %s100, %s116
      %p118 = scmp.eq.s32.totalorder %s28, 0
      %p119 = por %p117, %p118
      %s120 = ssub.s32 %s30, %s37
      %p121 = scmp.eq.s32.totalorder %s120, 0
      %s123 = sadd.s32 %s122, 1
      %s124 = scalar_select %p121, %s122, %s123
      %p127 = pneg %p121
      %p128 = scmp.eq.s32.totalorder %s22, 3
      %p129 = por %p127, %p128
      %p130 = scmp.ne.s32.totalorder %s122, %s125
      %p131 = scmp.eq.s32.totalorder %s22, 0
      %p132 = por %p130, %p131
      %p133 = scmp.ne.s32.totalorder %s122, %s125
      %p134 = scmp.eq.s32.totalorder %s27, 3
      %p135 = por %p133, %p134
      %p136 = scmp.ne.s32.totalorder %s125, %s126
      %p137 = scmp.eq.s32.totalorder %s27, 0
      %p138 = por %p136, %p137
      %p139 = scmp.ne.s32.totalorder %s125, %s126
      %p140 = scmp.eq.s32.totalorder %s28, 3
      %p141 = por %p139, %p140
      %p143 = scmp.ne.s32.totalorder %s126, %s142
      %p144 = scmp.eq.s32.totalorder %s28, 0
      %p145 = por %p143, %p144
      %s147 = sadd.s32 %s146, 1
      %p150 = scmp.eq.s32.totalorder %s22, 3
      %p151 = scmp.ne.s32.totalorder %s146, %s148
      %p152 = scmp.eq.s32.totalorder %s22, 0
      %p153 = por %p151, %p152
      %p154 = scmp.ne.s32.totalorder %s146, %s148
      %p155 = scmp.eq.s32.totalorder %s27, 3
      %p156 = por %p154, %p155
      %p157 = scmp.ne.s32.totalorder %s148, %s149
      %p158 = scmp.eq.s32.totalorder %s27, 0
      %p159 = por %p157, %p158
      %p160 = scmp.ne.s32.totalorder %s148, %s149
      %p161 = scmp.eq.s32.totalorder %s28, 3
      %p162 = por %p160, %p161
      %p164 = scmp.ne.s32.totalorder %s149, %s163
      %p165 = scmp.eq.s32.totalorder %s28, 0
      %p166 = por %p164, %p165
      %s168 = sadd.s32 %s167, 1
      %p171 = scmp.eq.s32.totalorder %s22, 3
      %p172 = scmp.ne.s32.totalorder %s167, %s169
      %p173 = scmp.eq.s32.totalorder %s22, 0
      %p174 = por %p172, %p173
      %p175 = scmp.ne.s32.totalorder %s167, %s169
      %p176 = scmp.eq.s32.totalorder %s27, 3
      %p177 = por %p175, %p176
      %p178 = scmp.ne.s32.totalorder %s169, %s170
      %p179 = scmp.eq.s32.totalorder %s27, 0
      %p180 = por %p178, %p179
      %p181 = scmp.ne.s32.totalorder %s169, %s170
      %p182 = scmp.eq.s32.totalorder %s28, 3
      %p183 = por %p181, %p182
      %p185 = scmp.ne.s32.totalorder %s170, %s184
      %p186 = scmp.eq.s32.totalorder %s28, 0
      %p187 = por %p185, %p186
      %s189 = sadd.s32 %s188, 1
      %p192 = scmp.eq.s32.totalorder %s22, 3
      %p193 = scmp.ne.s32.totalorder %s188, %s190
      %p194 = scmp.eq.s32.totalorder %s22, 0
      %p195 = por %p193, %p194
      %p196 = scmp.ne.s32.totalorder %s188, %s190
      %p197 = scmp.eq.s32.totalorder %s27, 3
      %p198 = por %p196, %p197
      %p199 = scmp.ne.s32.totalorder %s190, %s191
      %p200 = scmp.eq.s32.totalorder %s27, 0
      %p201 = por %p199, %p200
      %p202 = scmp.ne.s32.totalorder %s190, %s191
      %p203 = scmp.eq.s32.totalorder %s28, 3
      %p204 = por %p202, %p203
      %p206 = scmp.ne.s32.totalorder %s191, %s205
      %p207 = scmp.eq.s32.totalorder %s28, 0
      %p208 = por %p206, %p207
      %s209 = ssub.s32 %s29, %s41
      %p210 = scmp.eq.s32.totalorder %s209, 0
      %s212 = sadd.s32 %s211, 1
      %s213 = scalar_select %p210, %s211, %s212
      %p216 = pneg %p210
      %p217 = scmp.eq.s32.totalorder %s22, 3
      %p218 = por %p216, %p217
      %p219 = scmp.ne.s32.totalorder %s211, %s214
      %p220 = scmp.eq.s32.totalorder %s22, 0
      %p221 = por %p219, %p220
      %p222 = scmp.ne.s32.totalorder %s211, %s214
      %p223 = scmp.eq.s32.totalorder %s27, 3
      %p224 = por %p222, %p223
      %p225 = scmp.ne.s32.totalorder %s214, %s215
      %p226 = scmp.eq.s32.totalorder %s27, 0
      %p227 = por %p225, %p226
      %p228 = scmp.ne.s32.totalorder %s214, %s215
      %p229 = scmp.eq.s32.totalorder %s28, 3
      %p230 = por %p228, %p229
      %p232 = scmp.ne.s32.totalorder %s215, %s231
      %p233 = scmp.eq.s32.totalorder %s28, 0
      %p234 = por %p232, %p233
      %p235 = scmp.le.s32.totalorder 1, %s22
      %p236 = scmp.lt.s32.totalorder %s22, 5
      %p237 = pnand %p235, %p236
      %p238 = pneg %p237
      // Predicated region
      $region9: #{tpu_custom_call.1} parent=5 // pred_check
        _
      $region10: #{tpu_custom_call.1} parent=5 // pred_check_branch
        %240 = sbr.rel (%p237) target = $region12
      $region11: #{tpu_custom_call.1} parent=5 // pred_region
        %s241 = ssub.s32 %s22, 1
        // Predicated region
        $region13: #{tpu_custom_call.1} parent=11 // pred_check
          %p242 = pneg %p159
        $region14: #{tpu_custom_call.1} parent=11 // pred_check_branch
          %244 = sbr.rel (%p242) target = $region16
        $region15: #{tpu_custom_call.1} parent=11 // pred_region
          _
        $region16: #{tpu_custom_call.1} parent=11 // pred_fallthru
          _
        // Predicated region
        $region17: #{tpu_custom_call.1} parent=11 // pred_check
          %p245 = pneg %p180
        $region18: #{tpu_custom_call.1} parent=11 // pred_check_branch
          %247 = sbr.rel (%p245) target = $region20
        $region19: #{tpu_custom_call.1} parent=11 // pred_region
          _
        $region20: #{tpu_custom_call.1} parent=11 // pred_fallthru
          _
        // Predicated region
        $region21: #{tpu_custom_call.1} parent=11 // pred_check
          %p248 = pneg %p201
        $region22: #{tpu_custom_call.1} parent=11 // pred_check_branch
          %250 = sbr.rel (%p248) target = $region24
        $region23: #{tpu_custom_call.1} parent=11 // pred_region
          _
        $region24: #{tpu_custom_call.1} parent=11 // pred_fallthru
          _
      $region12: #{tpu_custom_call.1} parent=5 // pred_fallthru
        _
      %p251 = scmp.lt.s32.totalorder %s22, 4
      // Predicated region
      $region25: #{tpu_custom_call.1} parent=5 // pred_check
        %p252 = pneg %p251
      $region26: #{tpu_custom_call.1} parent=5 // pred_check_branch
        %254 = sbr.rel (%p252) target = $region28
      $region27: #{tpu_custom_call.1} parent=5 // pred_region
        // Predicated region
        $region29: #{tpu_custom_call.1} parent=27 // pred_check
          %p255 = pneg %p54
        $region30: #{tpu_custom_call.1} parent=27 // pred_check_branch
          %257 = sbr.rel (%p255) target = $region32
        $region31: #{tpu_custom_call.1} parent=27 // pred_region
          %s258 = sand.u32 %s44, 1
          %s259 = scalar_lea.sflag [#allocation4], %s258
          %s260 = sand.u32 %s44, 1
          %s261 = smul.addr %s260, 8
          %s262 = scalar_lea.vmem [#allocation3], %s261
          %s264 = ssub.s32 128, 128
          %265 = vsyncadd %s259, %s264
          %s266 = smul.addr %s29, 128
          %s267 = scalar_lea.hbm %s0, %s266
          %s269 = sshll.u32 %s262, 4
          %s270 = int_to_ptr.vmem [resolvable:$true] %s269
          %272 = dma.hbm_to_vmem [thread:$0]  %s267, 128, %s270, %s259
        $region32: #{tpu_custom_call.1} parent=27 // pred_fallthru
          _
        // Predicated region
        $region33: #{tpu_custom_call.1} parent=27 // pred_check
          %p273 = pneg %p80
        $region34: #{tpu_custom_call.1} parent=27 // pred_check_branch
          %275 = sbr.rel (%p273) target = $region36
        $region35: #{tpu_custom_call.1} parent=27 // pred_region
          %s276 = sand.u32 %s22, 1
          %s277 = scalar_lea.sflag [#allocation7], %s276
          %s278 = sand.u32 %s70, 1
          %s279 = smul.addr %s278, 128
          %s280 = scalar_lea.vmem [#allocation6], %s279
          %s282 = ssub.s32 2048, 2048
          %283 = vsyncadd %s277, %s282
          %s284 = smul.addr %s30, 128
          %s285 = scalar_lea.hbm %s1, %s284
          %s286 = sshll.u32 %s280, 4
          %s287 = int_to_ptr.vmem [resolvable:$true] %s286
          %292 = dma.hbm_to_vmem [thread:$0]  %s285, 2048, %s287, %s277, 256, 128, 8
        $region36: #{tpu_custom_call.1} parent=27 // pred_fallthru
          _
        // Predicated region
        $region37: #{tpu_custom_call.1} parent=27 // pred_check
          %p293 = pneg %p106
        $region38: #{tpu_custom_call.1} parent=27 // pred_check_branch
          %295 = sbr.rel (%p293) target = $region40
        $region39: #{tpu_custom_call.1} parent=27 // pred_region
          %p296 = scmp.lt.s32.totalorder %s30, 1
          %s297 = scalar_select %p296, %s30, 1
          %s298 = scalar_lea.vmem %s2, %s297
        $region40: #{tpu_custom_call.1} parent=27 // pred_fallthru
          _
        // Predicated region
        $region41: #{tpu_custom_call.1} parent=27 // pred_check
          %p299 = pneg %p132
        $region42: #{tpu_custom_call.1} parent=27 // pred_check_branch
          %301 = sbr.rel (%p299) target = $region44
        $region43: #{tpu_custom_call.1} parent=27 // pred_region
          %s302 = sand.u32 %s22, 1
          %s303 = scalar_lea.sflag [#allocation7], %s302
          %s304 = sand.u32 %s122, 1
          %s305 = smul.addr %s304, 128
          %s306 = scalar_lea.vmem [#allocation8], %s305
          %s307 = smul.u32 16, %s30
          %s309 = ssub.s32 2048, 2048
          %310 = vsyncadd %s303, %s309
          %s311 = smul.addr %s307, 128
          %s312 = scalar_lea.hbm %s3, %s311
          %s313 = sshll.u32 %s306, 4
          %s314 = int_to_ptr.vmem [resolvable:$true] %s313
          %319 = dma.hbm_to_vmem [thread:$0]  %s312, 2048, %s314, %s303, 128, 128, 8
        $region44: #{tpu_custom_call.1} parent=27 // pred_fallthru
          _
      $region28: #{tpu_custom_call.1} parent=5 // pred_fallthru
        _
      %p320 = scmp.le.s32.totalorder 1, %s22
      %p321 = scmp.lt.s32.totalorder %s22, 5
      %p322 = pnand %p320, %p321
      %p323 = pneg %p322
      // Predicated region
      $region45: #{tpu_custom_call.1} parent=5 // pred_check
        _
      $region46: #{tpu_custom_call.1} parent=5 // pred_check_branch
        %325 = sbr.rel (%p322) target = $region48
      $region47: #{tpu_custom_call.1} parent=5 // pred_region
        %s326 = ssub.s32 %s22, 1
        %s327 = sand.u32 %s47, 1
        %s328 = scalar_lea.sflag [#allocation4], %s327
        %s329 = sand.u32 %s47, 1
        %s330 = smul.addr %s329, 8
        %s331 = scalar_lea.vmem [#allocation3], %s330
        // Predicated region
        $region49: #{tpu_custom_call.1} parent=47 // pred_check
          %p332 = pneg %p60
        $region50: #{tpu_custom_call.1} parent=47 // pred_check_branch
          %334 = sbr.rel (%p332) target = $region52
        $region51: #{tpu_custom_call.1} parent=47 // pred_region
          %335 = dma.done %s328, 128
        $region52: #{tpu_custom_call.1} parent=47 // pred_fallthru
          _
        %s336 = sand.u32 %s27, 1
        %s337 = scalar_lea.sflag [#allocation7], %s336
        %s338 = sand.u32 %s73, 1
        %s339 = smul.addr %s338, 128
        %s340 = scalar_lea.vmem [#allocation6], %s339
        // Predicated region
        $region53: #{tpu_custom_call.1} parent=47 // pred_check
          %p341 = pneg %p86
        $region54: #{tpu_custom_call.1} parent=47 // pred_check_branch
          %343 = sbr.rel (%p341) target = $region56
        $region55: #{tpu_custom_call.1} parent=47 // pred_region
          %344 = dma.done %s337, 2048
        $region56: #{tpu_custom_call.1} parent=47 // pred_fallthru
          _
        %s345 = sand.u32 %s27, 1
        %s346 = scalar_lea.sflag [#allocation7], %s345
        %s347 = sand.u32 %s125, 1
        %s348 = smul.addr %s347, 128
        %s349 = scalar_lea.vmem [#allocation8], %s348
        // Predicated region
        $region57: #{tpu_custom_call.1} parent=47 // pred_check
          %p350 = pneg %p138
        $region58: #{tpu_custom_call.1} parent=47 // pred_check_branch
          %352 = sbr.rel (%p350) target = $region60
        $region59: #{tpu_custom_call.1} parent=47 // pred_region
          %353 = dma.done %s346, 2048
        $region60: #{tpu_custom_call.1} parent=47 // pred_fallthru
          _
        %s354 = sand.u32 %s47, 1
        %s355 = scalar_lea.sflag [#allocation4], %s354
        %s356 = sand.u32 %s47, 1
        %s357 = smul.addr %s356, 8
        %s358 = scalar_lea.vmem [#allocation3], %s357
        %p359 = pneg %p60
        %p360 = pneg %p57
        %s361 = sand.u32 %s27, 1
        %s362 = scalar_lea.sflag [#allocation7], %s361
        %s363 = sand.u32 %s73, 1
        %s364 = smul.addr %s363, 128
        %s365 = scalar_lea.vmem [#allocation6], %s364
        %p366 = pneg %p86
        %p367 = pneg %p83
        %p368 = scmp.lt.s32.totalorder %s32, 1
        %s369 = scalar_select %p368, %s32, 1
        %s370 = scalar_lea.vmem %s2, %s369
        %p371 = pneg %p112
        %p372 = pneg %p109
        %s373 = sand.u32 %s27, 1
        %s374 = scalar_lea.sflag [#allocation7], %s373
        %s375 = sand.u32 %s125, 1
        %s376 = smul.addr %s375, 128
        %s377 = scalar_lea.vmem [#allocation8], %s376
        %p378 = pneg %p138
        %p379 = pneg %p135
        %p380 = pneg %p159
        %p381 = pneg %p156
        %p382 = pneg %p180
        %p383 = pneg %p177
        %p384 = pneg %p201
        %p385 = pneg %p198
        %p386 = pneg %p227
        %p387 = pneg %p224
        %s388 = sand.u32 %s214, 1
        %s389 = scalar_lea.sflag [#allocation5], %s388
        %s390 = sand.u32 %s214, 1
        %s391 = smul.addr %s390, 8
        %s392 = scalar_lea.vmem [#allocation9], %s391
        %p393 = scmp.lt.s32.totalorder %s32, 1
        %s394 = scalar_select %p393, %s32, 1
        %s395 = scalar_lea.vmem %s2, %s394
        %s396 = smul.u32 16, %s32
        %p397 = scmp.eq.s32.totalorder %s32, 0
        // Predicated region
        $region61: #{tpu_custom_call.1} parent=47 // pred_check
          %p398 = pneg %p397
        $region62: #{tpu_custom_call.1} parent=47 // pred_check_branch
          %400 = sbr.rel (%p398) target = $region64
        $region63: #{tpu_custom_call.1} parent=47 // pred_region
          %v401 = vld [vmem:[%s331] sm:$0xff]
          %v402 = vld [vmem:[%s4] sm:$0x1]
          %v404 = vlaneseq
          %v405 = vshrl.u32 %v404, 7
          %v406 = vsub.s32 0, %v405
          %v407 = vrot.slane %v402, %v406
          %v409 = vadd.f32 %v401, %v407
          %410 = vst [vmem:[#allocation2] sm:$0xff] %v409
        $region64: #{tpu_custom_call.1} parent=47 // pred_fallthru
          _
        %v411 = vld [vmem:[%s331] sm:$0xff]
        %v412 = vld [vmem:[%s340] sm:$0xff]
        %v413 = vld [vmem:[%s340 + $0x8] sm:$0xff]
        %v414 = vld [vmem:[%s340 + $0x10] sm:$0xff]
        %v415 = vld [vmem:[%s340 + $0x18] sm:$0xff]
        %v416 = vld [vmem:[%s340 + $0x20] sm:$0xff]
        %v417 = vld [vmem:[%s340 + $0x28] sm:$0xff]
        %v418 = vld [vmem:[%s340 + $0x30] sm:$0xff]
        %v419 = vld [vmem:[%s340 + $0x38] sm:$0xff]
        %v420 = vld [vmem:[%s340 + $0x40] sm:$0xff]
        %v421 = vld [vmem:[%s340 + $0x48] sm:$0xff]
        %v422 = vld [vmem:[%s340 + $0x50] sm:$0xff]
        %v423 = vld [vmem:[%s340 + $0x58] sm:$0xff]
        %v424 = vld [vmem:[%s340 + $0x60] sm:$0xff]
        %v425 = vld [vmem:[%s340 + $0x68] sm:$0xff]
        %v426 = vld [vmem:[%s340 + $0x70] sm:$0xff]
        %v427 = vld [vmem:[%s340 + $0x78] sm:$0xff]
        %v428 = vld [vmem:[%s395] sm:$0x1]
        %v430 = vlaneseq
        %v431 = vshrl.u32 %v430, 7
        %v432 = vsub.s32 0, %v431
        %v433 = vrot.slane %v428, %v432
        %435 = vmatprep.subr.mxu0 0.0
        %436 = vmatpush1.msra.mxu0 %v412
        %437 = vmatprep.subr.mxu0 0.0
        %438 = vmatpush1.msra.mxu0 %v413
        %439 = vmatprep.subr.mxu0 0.0
        %440 = vmatpush1.msra.mxu0 %v414
        %441 = vmatprep.subr.mxu0 0.0
        %442 = vmatpush1.msra.mxu0 %v415
        %443 = vmatprep.subr.mxu0 0.0
        %444 = vmatpush1.msra.mxu0 %v416
        %445 = vmatprep.subr.mxu0 0.0
        %446 = vmatpush1.msra.mxu0 %v417
        %447 = vmatprep.subr.mxu0 0.0
        %448 = vmatpush1.msra.mxu0 %v418
        %449 = vmatprep.subr.mxu0 0.0
        %450 = vmatpush1.msra.mxu0 %v419
        %451 = vmatprep.subr.mxu0 0.0
        %452 = vmatpush1.msra.mxu0 %v420
        %453 = vmatprep.subr.mxu0 0.0
        %454 = vmatpush1.msra.mxu0 %v421
        %455 = vmatprep.subr.mxu0 0.0
        %456 = vmatpush1.msra.mxu0 %v422
        %457 = vmatprep.subr.mxu0 0.0
        %458 = vmatpush1.msra.mxu0 %v423
        %459 = vmatprep.subr.mxu0 0.0
        %460 = vmatpush1.msra.mxu0 %v424
        %461 = vmatprep.subr.mxu0 0.0
        %462 = vmatpush1.msra.mxu0 %v425
        %463 = vmatprep.subr.mxu0 0.0
        %464 = vmatpush1.msra.mxu0 %v426
        %465 = vmatprep.subr.mxu0 0.0
        %466 = vmatpush1.msra.mxu0 %v427
        %467 = vmatprep.subr.mxu0 0.0
        %468 = vmatpush1.msra.mxu0 0.0
        %469 = vmatprep.subr.mxu0 0.0
        %470 = vmatpush1.msra.mxu0 0.0
        %471 = vmatprep.subr.mxu0 0.0
        %472 = vmatpush1.msra.mxu0 0.0
        %473 = vmatprep.subr.mxu0 0.0
        %474 = vmatpush1.msra.mxu0 0.0
        %475 = vmatprep.subr.mxu0 0.0
        %476 = vmatpush1.msra.mxu0 0.0
        %477 = vmatprep.subr.mxu0 0.0
        %478 = vmatpush1.msra.mxu0 0.0
        %479 = vmatprep.subr.mxu0 0.0
        %480 = vmatpush1.msra.mxu0 0.0
        %481 = vmatprep.subr.mxu0 0.0
        %482 = vmatpush1.msra.mxu0 0.0
        %483 = vmatprep.subr.mxu0 0.0
        %484 = vmatpush1.msra.mxu0 0.0
        %485 = vmatprep.subr.mxu0 0.0
        %486 = vmatpush1.msra.mxu0 0.0
        %487 = vmatprep.subr.mxu0 0.0
        %488 = vmatpush1.msra.mxu0 0.0
        %489 = vmatprep.subr.mxu0 0.0
        %490 = vmatpush1.msra.mxu0 0.0
        %491 = vmatprep.subr.mxu0 0.0
        %492 = vmatpush1.msra.mxu0 0.0
        %493 = vmatprep.subr.mxu0 0.0
        %494 = vmatpush1.msra.mxu0 0.0
        %495 = vmatprep.subr.mxu0 0.0
        %496 = vmatpush1.msra.mxu0 0.0
        %497 = vmatprep.subr.mxu0 0.0
        %498 = vmatpush1.msra.mxu0 0.0
        %499 = vmatprep.mubr.f32.mxu0 0.0
        %500 = vmatmul.mubr.f32.gmra.mrb[0].mxu0 %v411
        %v501 = vpop.f32.mrb[0].mxu0
        %v502 = vadd.f32 %v433, %v501
        %v503 = vpop.f32.mrb[0].mxu0
        %504 = vdwg.mxu0
        %v505 = vmax.f32 %v502, 0.0
        %v506 = vld [vmem:[#allocation2] sm:$0xff]
        %v507 = vld [vmem:[%s349] sm:$0xff]
        %v508 = vld [vmem:[%s349 + $0x8] sm:$0xff]
        %v509 = vld [vmem:[%s349 + $0x10] sm:$0xff]
        %v510 = vld [vmem:[%s349 + $0x18] sm:$0xff]
        %v511 = vld [vmem:[%s349 + $0x20] sm:$0xff]
        %v512 = vld [vmem:[%s349 + $0x28] sm:$0xff]
        %v513 = vld [vmem:[%s349 + $0x30] sm:$0xff]
        %v514 = vld [vmem:[%s349 + $0x38] sm:$0xff]
        %v515 = vld [vmem:[%s349 + $0x40] sm:$0xff]
        %v516 = vld [vmem:[%s349 + $0x48] sm:$0xff]
        %v517 = vld [vmem:[%s349 + $0x50] sm:$0xff]
        %v518 = vld [vmem:[%s349 + $0x58] sm:$0xff]
        %v519 = vld [vmem:[%s349 + $0x60] sm:$0xff]
        %v520 = vld [vmem:[%s349 + $0x68] sm:$0xff]
        %v521 = vld [vmem:[%s349 + $0x70] sm:$0xff]
        %v522 = vld [vmem:[%s349 + $0x78] sm:$0xff]
        %523 = vmatprep.subr.mxu0 0.0
        %524 = vmatpush1.msra.mxu0 %v507
        %525 = vmatprep.subr.mxu0 0.0
        %526 = vmatpush1.msra.mxu0 %v508
        %527 = vmatprep.subr.mxu0 0.0
        %528 = vmatpush1.msra.mxu0 %v509
        %529 = vmatprep.subr.mxu0 0.0
        %530 = vmatpush1.msra.mxu0 %v510
        %531 = vmatprep.subr.mxu0 0.0
        %532 = vmatpush1.msra.mxu0 %v511
        %533 = vmatprep.subr.mxu0 0.0
        %534 = vmatpush1.msra.mxu0 %v512
        %535 = vmatprep.subr.mxu0 0.0
        %536 = vmatpush1.msra.mxu0 %v513
        %537 = vmatprep.subr.mxu0 0.0
        %538 = vmatpush1.msra.mxu0 %v514
        %539 = vmatprep.subr.mxu0 0.0
        %540 = vmatpush1.msra.mxu0 %v515
        %541 = vmatprep.subr.mxu0 0.0
        %542 = vmatpush1.msra.mxu0 %v516
        %543 = vmatprep.subr.mxu0 0.0
        %544 = vmatpush1.msra.mxu0 %v517
        %545 = vmatprep.subr.mxu0 0.0
        %546 = vmatpush1.msra.mxu0 %v518
        %547 = vmatprep.subr.mxu0 0.0
        %548 = vmatpush1.msra.mxu0 %v519
        %549 = vmatprep.subr.mxu0 0.0
        %550 = vmatpush1.msra.mxu0 %v520
        %551 = vmatprep.subr.mxu0 0.0
        %552 = vmatpush1.msra.mxu0 %v521
        %553 = vmatprep.subr.mxu0 0.0
        %554 = vmatpush1.msra.mxu0 %v522
        %555 = vmatprep.subr.mxu0 0.0
        %556 = vmatpush1.msra.mxu0 0.0
        %557 = vmatprep.subr.mxu0 0.0
        %558 = vmatpush1.msra.mxu0 0.0
        %559 = vmatprep.subr.mxu0 0.0
        %560 = vmatpush1.msra.mxu0 0.0
        %561 = vmatprep.subr.mxu0 0.0
        %562 = vmatpush1.msra.mxu0 0.0
        %563 = vmatprep.subr.mxu0 0.0
        %564 = vmatpush1.msra.mxu0 0.0
        %565 = vmatprep.subr.mxu0 0.0
        %566 = vmatpush1.msra.mxu0 0.0
        %567 = vmatprep.subr.mxu0 0.0
        %568 = vmatpush1.msra.mxu0 0.0
        %569 = vmatprep.subr.mxu0 0.0
        %570 = vmatpush1.msra.mxu0 0.0
        %571 = vmatprep.subr.mxu0 0.0
        %572 = vmatpush1.msra.mxu0 0.0
        %573 = vmatprep.subr.mxu0 0.0
        %574 = vmatpush1.msra.mxu0 0.0
        %575 = vmatprep.subr.mxu0 0.0
        %576 = vmatpush1.msra.mxu0 0.0
        %577 = vmatprep.subr.mxu0 0.0
        %578 = vmatpush1.msra.mxu0 0.0
        %579 = vmatprep.subr.mxu0 0.0
        %580 = vmatpush1.msra.mxu0 0.0
        %581 = vmatprep.subr.mxu0 0.0
        %582 = vmatpush1.msra.mxu0 0.0
        %583 = vmatprep.subr.mxu0 0.0
        %584 = vmatpush1.msra.mxu0 0.0
        %585 = vmatprep.subr.mxu0 0.0
        %586 = vmatpush1.msra.mxu0 0.0
        %587 = vmatprep.mubr.f32.mxu0 0.0
        %588 = vmatmul.mubr.f32.gmra.mrb[0].mxu0 %v505
        %v589 = vpop.f32.mrb[0].mxu0
        %v590 = vadd.f32 0.0, %v589
        %v591 = vpop.f32.mrb[0].mxu0
        %592 = vdwg.mxu0
        %v593 = vadd.f32 %v506, %v590
        %594 = vst [vmem:[#allocation2] sm:$0xff] %v593
        %p595 = scmp.eq.s32.totalorder %s32, 1
        // Predicated region
        $region65: #{tpu_custom_call.1} parent=47 // pred_check
          %p596 = pneg %p595
        $region66: #{tpu_custom_call.1} parent=47 // pred_check_branch
          %598 = sbr.rel (%p596) target = $region68
        $region67: #{tpu_custom_call.1} parent=47 // pred_region
          %v599 = vld [vmem:[#allocation2] sm:$0xff]
          %600 = vadd.xlane.f32.xlu0 %v599
          %v601 = vpop.xlane.xlu0 %600
          %v602 = vrcp.pop 128.0
          %v603 = vmul.f32 %v601, %v602
          %v604 = vsub.f32 %v599, %v603
          %v605 = vmul.f32 %v604, %v604
          %606 = vadd.xlane.f32.xlu0 %v605
          %v607 = vpop.xlane.xlu0 %606
          %v608 = vmul.f32 %v607, %v602
          %v609 = vadd.f32 %v608, 1e-05
          %v610 = vrsqrt.pop %v609
          %v611 = vmul.f32 %v604, %v610
          %v612 = vld [vmem:[%s5] sm:$0x1]
          %v614 = vlaneseq
          %v615 = vshrl.u32 %v614, 7
          %v616 = vsub.s32 0, %v615
          %v617 = vrot.slane %v612, %v616
          %v619 = vmul.f32 %v611, %v617
          %v620 = vld [vmem:[%s6] sm:$0x1]
          %v622 = vlaneseq
          %v623 = vshrl.u32 %v622, 7
          %v624 = vsub.s32 0, %v623
          %v625 = vrot.slane %v620, %v624
          %v627 = vadd.f32 %v619, %v625
          %628 = vst [vmem:[%s392] sm:$0xff] %v627
        $region68: #{tpu_custom_call.1} parent=47 // pred_fallthru
          _
        %s629 = sand.u32 %s214, 1
        %s630 = scalar_lea.sflag [#allocation5], %s629
        %s631 = sand.u32 %s214, 1
        %s632 = smul.addr %s631, 8
        %s633 = scalar_lea.vmem [#allocation9], %s632
        // Predicated region
        $region69: #{tpu_custom_call.1} parent=47 // pred_check
          %p634 = pneg %p224
        $region70: #{tpu_custom_call.1} parent=47 // pred_check_branch
          %636 = sbr.rel (%p634) target = $region72
        $region71: #{tpu_custom_call.1} parent=47 // pred_region
          %s638 = ssub.s32 128, 128
          %639 = vsyncadd %s630, %s638
          %s640 = smul.addr %s31, 128
          %s641 = scalar_lea.hbm %s7, %s640
          %s643 = sshll.u32 %s633, 4
          %s644 = int_to_ptr.vmem [resolvable:$true] %s643
          %646 = dma.vmem_to_hbm [thread:$0]  %s644, 128, %s641, %s630
        $region72: #{tpu_custom_call.1} parent=47 // pred_fallthru
          _
      $region48: #{tpu_custom_call.1} parent=5 // pred_fallthru
        _
      %p647 = scmp.le.s32.totalorder 2, %s22
      // Predicated region
      $region73: #{tpu_custom_call.1} parent=5 // pred_check
        %p648 = pneg %p647
      $region74: #{tpu_custom_call.1} parent=5 // pred_check_branch
        %650 = sbr.rel (%p648) target = $region76
      $region75: #{tpu_custom_call.1} parent=5 // pred_region
        %s651 = ssub.s32 %s22, 2
        // Predicated region
        $region77: #{tpu_custom_call.1} parent=75 // pred_check
          %p652 = pneg %p230
        $region78: #{tpu_custom_call.1} parent=75 // pred_check_branch
          %654 = sbr.rel (%p652) target = $region80
        $region79: #{tpu_custom_call.1} parent=75 // pred_region
          %s655 = sand.u32 %s215, 1
          %s656 = scalar_lea.sflag [#allocation5], %s655
          %s657 = sand.u32 %s215, 1
          %s658 = smul.addr %s657, 8
          %s659 = scalar_lea.vmem [#allocation9], %s658
          %660 = dma.done %s656, 128
        $region80: #{tpu_custom_call.1} parent=75 // pred_fallthru
          _
      $region76: #{tpu_custom_call.1} parent=5 // pred_fallthru
        _
    $region6: #{tpu_custom_call.1} parent=1 // loop_footer
      %s26 = sadd.s32 1, %s22
    $region7: #{tpu_custom_call.1} parent=1 // loop_footer_branch
      %21 = sbr.rel target = $region3
    $region8: #{tpu_custom_call.1} parent=1 // loop_exit
      _
    %661 = vsyncpa [#allocation4], 1
    %s662 = scalar_lea.sflag [#allocation4], 1
    %663 = vsyncpa %s662, 1
    %664 = vsyncpa [#allocation7], 1
    %s665 = scalar_lea.sflag [#allocation7], 1
    %666 = vsyncpa %s665, 1
    %667 = vsyncpa [#allocation5], 1
    %s668 = scalar_lea.sflag [#allocation5], 1
    %669 = vsyncpa %s668, 1

</llo_original>
